<compile_context>
chip_gen: v7x
topology: tpu7x:2x2x1
jax: 0.10.0
libtpu: 0.0.40
codegen_flags: <defaults>
</compile_context>

<pallas_src>
import jax
import jax.numpy as jnp
from jax.experimental import pallas as pl
from jax.experimental.pallas import tpu as pltpu

_LANE = 128
_SUBLANE_BF16 = 16            # bf16 sublane pack: round small batch blocks to this


def _round_up(x, m):
    return (x + m - 1) // m * m


def _make_mlp_kernel(num_hidden, activations):
    """Fused kernel for `num_hidden` hidden layers + softmax output layer."""
    acts = [a.upper() for a in activations]

    def kernel(*refs):
        # refs = (x, w0, b0, w1, b1, ..., w_out, b_out, out)
        x_ref = refs[0]
        out_ref = refs[-1]
        C = out_ref.shape[1]                    # real (unpadded) class count

        h = x_ref[...]                          # bf16 input tile -> straight to MXU
        idx = 1
        for l in range(num_hidden):
            w = refs[idx][...]                  # bf16, resident in VMEM across the grid
            b = refs[idx + 1][...]              # f32, padded cols = 0
            idx += 2
            z = jnp.dot(h, w, preferred_element_type=jnp.float32) + b
            a = acts[l]
            if a == "SIGMOID":
                act = pl.reciprocal(1.0 + jnp.exp(-z), approx=False)
            elif a == "TANH":
                act = jnp.tanh(z)
            elif a == "RELU":
                act = jnp.maximum(z, 0.0)
            elif a == "LRELU":
                act = jnp.where(z >= 0.0, z, 0.01 * z)   # F.leaky_relu default slope
            else:
                act = z
            # single cast per layer: f32 activation math, bf16 MXU operand.
            # (Padded lanes may be nonzero, e.g. sigmoid(0)=0.5; the next layer's
            #  padded weight ROWS are exactly zero, so they never contribute.)
            h = act.astype(jnp.bfloat16)

        w_out = refs[idx][...]                  # bf16, class axis zero-padded to 128
        b_out = refs[idx + 1][...]              # f32, padded classes = -1e30
        logits = jnp.dot(h, w_out, preferred_element_type=jnp.float32) + b_out

        # softmax over the (lane-dense, padded) class axis; padded logits = -1e30 -> exp == 0
        m = jnp.max(logits, axis=1, keepdims=True)
        e = jnp.exp(logits - m)
        s = jnp.sum(e, axis=1, keepdims=True)
        p = e * pl.reciprocal(s, approx=False)
        # store only the real classes -> HBM writeback is (TB, C) instead of (TB, 128)
        out_ref[...] = p[:, :C]

    return kernel


def neural_net_forward(x, hidden_params, out_params, activations, *, batch_tile=512):
    """Forward pass of NeuralNet.

    x: (B, input_size) f32
    hidden_params: list of (W_(in,out), b_(1,out))  (W already transposed vs PyTorch)
    out_params:   (W_out_(in, C), b_out_(1, C))
    activations:  str or list of str (per hidden layer)
    """
    if isinstance(activations, str):
        activations = [activations] * len(hidden_params)
    assert len(activations) == len(hidden_params)

    B, F_in = x.shape
    C = out_params[0].shape[1]

    # ---- adaptive batch tiling ------------------------------------------------
    if B <= batch_tile:
        TB = _round_up(B, _SUBLANE_BF16)        # single grid step, minimal padding
        B_pad = TB
    else:
        TB = batch_tile
        B_pad = _round_up(B, TB)

    # bf16 input DMA: halves the HBM read stream; operand is bf16 on the MXU anyway.
    x = x.astype(jnp.bfloat16)
    if B_pad != B:
        x = jnp.pad(x, ((0, B_pad - B), (0, 0)))

    # ---- lane-dense hidden widths: zero-pad feature dims to multiples of 128 ---
    # (F_in is deliberately left unpadded: it is the HBM-bound input stream.)
    params = []
    prev_real = F_in
    prev_pad = F_in
    for (w, b) in hidden_params:
        n_out = w.shape[1]
        n_out_pad = _round_up(n_out, _LANE)
        w_p = jnp.zeros((prev_pad, n_out_pad), jnp.bfloat16)
        w_p = w_p.at[:prev_real, :n_out].set(w.astype(jnp.bfloat16))
        b_p = jnp.zeros((1, n_out_pad), jnp.float32)
        b_p = b_p.at[:, :n_out].set(b.astype(jnp.float32).reshape(1, -1))
        params += [w_p, b_p]
        prev_real, prev_pad = n_out, n_out_pad

    C_pad = _round_up(C, _LANE)
    w_o, b_o = out_params
    w_out = jnp.zeros((prev_pad, C_pad), jnp.bfloat16)
    w_out = w_out.at[:prev_real, :C].set(w_o.astype(jnp.bfloat16))
    b_out = jnp.full((1, C_pad), -1e30, jnp.float32)          # padded logits -> exp == 0
    b_out = b_out.at[:, :C].set(b_o.astype(jnp.float32).reshape(1, -1))
    params += [w_out, b_out]

    def resident(shape):
        # same block for every grid step -> fetched once, pinned in VMEM
        return pl.BlockSpec(shape, lambda i: (0, 0))

    param_specs = [resident(p.shape) for p in params]

    # ---- explicit VMEM budget (v7x: 64 MiB/TC physical; v5e: 16 MiB default scoped) ----
    resident_bytes = sum(int(p.size) * p.dtype.itemsize for p in params)
    x_tile_bytes = 2 * TB * F_in * 2            # double-buffered bf16 input tile
    out_tile_bytes = 2 * TB * C * 4             # double-buffered f32 output tile
    widest = max([F_in, C_pad] + [int(p.shape[1]) for p in params[0::2]])
    work_bytes = 6 * TB * widest * 4            # in-flight f32 intermediates (headroom)
    vmem_needed = resident_bytes + x_tile_bytes + out_tile_bytes + work_bytes + (2 << 20)
    VMEM_BUDGET = 48 << 20
    # TODO(synk): if resident params ever exceed this budget (wide models), stream
    # weights over a layer/K grid axis instead of keeping them all VMEM-resident.
    assert vmem_needed <= VMEM_BUDGET, (
        f"resident-weight strategy needs ~{vmem_needed / 2**20:.1f} MiB VMEM "
        f"(> {VMEM_BUDGET / 2**20:.0f} MiB budget); stream weights instead")
    vmem_limit_bytes = int(min(VMEM_BUDGET, max(32 << 20, 2 * vmem_needed)))

    # ---- advisory cost estimate -----------------------------------------------
    layer_dims = [(int(p.shape[0]), int(p.shape[1])) for p in params[0::2]]
    flops = 2 * B_pad * sum(i * o for i, o in layer_dims)
    trans_per_row = C_pad + sum(
        layer_dims[l][1] for l, a in enumerate(activations)
        if a.upper() in ("SIGMOID", "TANH"))
    transcendentals = B_pad * trans_per_row
    bytes_accessed = x.size * 2 + B_pad * C * 4 + resident_bytes

    kernel = _make_mlp_kernel(len(hidden_params), activations)
    out = pl.pallas_call(
        kernel,
        out_shape=jax.ShapeDtypeStruct((B_pad, C), jnp.float32),
        grid=(B_pad // TB,),
        in_specs=[pl.BlockSpec((TB, F_in), lambda i: (i, 0))] + param_specs,
        out_specs=pl.BlockSpec((TB, C), lambda i: (i, 0)),
        compiler_params=pltpu.CompilerParams(
            dimension_semantics=("parallel",),
            vmem_limit_bytes=vmem_limit_bytes),
        cost_estimate=pl.CostEstimate(flops=int(flops),
                                      transcendentals=int(transcendentals),
                                      bytes_accessed=int(bytes_accessed)),
    )(x, *params)

    return out[:B, :]


# --------------------------- reference / test utils ------------------------------

def _init_linear(key, fan_in, fan_out):
    """Synthetic init mirroring nn.Linear's uniform(-1/sqrt(fan_in), +1/sqrt(fan_in)).
    Returns W of shape (fan_in, fan_out) (already transposed) and b of shape (1, fan_out)."""
    kw, kb = jax.random.split(key)
    bound = 1.0 / jnp.sqrt(jnp.float32(fan_in))
    w = jax.random.uniform(kw, (fan_in, fan_out), jnp.float32, -bound, bound)
    b = jax.random.uniform(kb, (1, fan_out), jnp.float32, -bound, bound)
    return w, b


def _apply_act(z, a):
    a = a.upper()
    if a == "SIGMOID":
        return 1.0 / (1.0 + jnp.exp(-z))
    if a == "TANH":
        return jnp.tanh(z)
    if a == "RELU":
        return jnp.maximum(z, 0.0)
    if a == "LRELU":
        return jnp.where(z >= 0.0, z, 0.01 * z)
    return z


def _reference_forward(x, hidden_params, out_params, activations, matmul_dtype=jnp.float32):
    h = x.astype(jnp.float32)
    for (w, b), a in zip(hidden_params, activations):
        z = jnp.dot(h.astype(matmul_dtype), w.astype(matmul_dtype),
                    preferred_element_type=jnp.float32) + b
        h = _apply_act(z, a)
    w_o, b_o = out_params
    logits = jnp.dot(h.astype(matmul_dtype), w_o.astype(matmul_dtype),
                     preferred_element_type=jnp.float32) + b_o
    return jax.nn.softmax(logits, axis=1)


if __name__ == "__main__":
    # NeuralNet(input_size=32, hidden_layer=[64, 32], num_classes=8)
    input_size = 32
    hidden_layer = [64, 32]
    num_classes = 8

    key = jax.random.PRNGKey(0)
    k_x, k0, k1, k_out, k_x2 = jax.random.split(key, 5)

    dims = [input_size] + hidden_layer
    hidden_params = []
    for i, k in enumerate([k0, k1]):
        hidden_params.append(_init_linear(k, dims[i], dims[i + 1]))
    out_params = _init_linear(k_out, hidden_layer[-1], num_classes)

    configs = [
        # small batch: single grid step, minimal padding (TB=16)
        (jax.random.normal(k_x, (8, input_size), jnp.float32), ["relu", "lrelu"], {}),
        # medium batch with the default adaptive tile: single block (TB=208)
        (jax.random.normal(k_x2, (200, input_size), jnp.float32), ["tanh", "sigmoid"], {}),
        # force the multi-block pipelined path (TB=128 -> B_pad=256, grid=2)
        (jax.random.normal(k_x2, (200, input_size), jnp.float32), ["tanh", "sigmoid"],
         {"batch_tile": 128}),
    ]

    for x, activations, kwargs in configs:
        out = jax.block_until_ready(
            neural_net_forward(x, hidden_params, out_params, activations, **kwargs))
        assert out.shape == (x.shape[0], num_classes)

        # tight check vs a reference using the same mixed precision (bf16 matmul, f32 accum)
        ref_mixed = _reference_forward(x, hidden_params, out_params, activations,
                                       matmul_dtype=jnp.bfloat16)
        assert jnp.allclose(out, ref_mixed, atol=1e-4, rtol=1e-4), "mismatch vs bf16 reference"

        # loose check vs the full-f32 reference (bf16 operand rounding only)
        ref_f32 = _reference_forward(x, hidden_params, out_params, activations,
                                     matmul_dtype=jnp.float32)
        assert jnp.allclose(out, ref_f32, atol=3e-2, rtol=3e-2), "mismatch vs f32 reference"

        # softmax rows sum to 1 (padded classes contribute exactly 0)
        assert jnp.allclose(out.sum(axis=1), 1.0, atol=1e-4)

    print("KERNEL_OK")
</pallas_src>

<mosaic_0001>
module attributes {stable_mosaic.version = 11 : i64} {
  func.func @kernel(%arg0: i32, %arg1: memref<16x32xbf16, #tpu.memory_space<vmem>>, %arg2: memref<32x128xbf16, #tpu.memory_space<vmem>>, %arg3: memref<1x128xf32, #tpu.memory_space<vmem>>, %arg4: memref<128x128xbf16, #tpu.memory_space<vmem>>, %arg5: memref<1x128xf32, #tpu.memory_space<vmem>>, %arg6: memref<128x128xbf16, #tpu.memory_space<vmem>>, %arg7: memref<1x128xf32, #tpu.memory_space<vmem>>, %arg8: memref<16x8xf32, #tpu.memory_space<vmem>>) attributes {dimension_semantics = [#tpu.dimension_semantics<parallel>], iteration_bounds = array<i64: 1>, scalar_prefetch = 0 : i64, scratch_operands = 0 : i64, tpu.core_type = #tpu.core_type<tc>, window_params = [{transform_indices = @transform_0, window_bounds = array<i64: 16, 32>}, {pipeline_mode = #tpu.pipeline_mode<synchronous>, transform_indices = @transform_1, window_bounds = array<i64: 32, 128>}, {pipeline_mode = #tpu.pipeline_mode<synchronous>, transform_indices = @transform_2, window_bounds = array<i64: 1, 128>}, {pipeline_mode = #tpu.pipeline_mode<synchronous>, transform_indices = @transform_3, window_bounds = array<i64: 128, 128>}, {pipeline_mode = #tpu.pipeline_mode<synchronous>, transform_indices = @transform_4, window_bounds = array<i64: 1, 128>}, {pipeline_mode = #tpu.pipeline_mode<synchronous>, transform_indices = @transform_5, window_bounds = array<i64: 128, 128>}, {pipeline_mode = #tpu.pipeline_mode<synchronous>, transform_indices = @transform_6, window_bounds = array<i64: 1, 128>}, {transform_indices = @transform_7, window_bounds = array<i64: 16, 8>}]} {
    %c0 = arith.constant 0 : index
    %c0_0 = arith.constant 0 : index
    %0 = vector.load %arg1[%c0, %c0_0] : memref<16x32xbf16, #tpu.memory_space<vmem>>, vector<16x32xbf16>
    %c0_1 = arith.constant 0 : index
    %c0_2 = arith.constant 0 : index
    %1 = vector.load %arg2[%c0_1, %c0_2] : memref<32x128xbf16, #tpu.memory_space<vmem>>, vector<32x128xbf16>
    %c0_3 = arith.constant 0 : index
    %c0_4 = arith.constant 0 : index
    %2 = vector.load %arg3[%c0_3, %c0_4] : memref<1x128xf32, #tpu.memory_space<vmem>>, vector<1x128xf32>
    %cst = arith.constant dense<0.000000e+00> : vector<16x128xf32>
    %3 = tpu.matmul %0, %1, %cst {dimension_numbers = #tpu.dot_dimension_numbers<[1], [0], [0], [1], [0, 0, 1, 1], [], []>} : vector<16x32xbf16>, vector<32x128xbf16>, vector<16x128xf32> -> vector<16x128xf32>
    %4 = vector.broadcast %2 : vector<1x128xf32> to vector<16x128xf32>
    %5 = arith.addf %3, %4 : vector<16x128xf32>
    %cst_5 = arith.constant 0.000000e+00 : f32
    %6 = vector.broadcast %cst_5 : f32 to vector<16x128xf32>
    %7 = arith.maximumf %5, %6 : vector<16x128xf32>
    %8 = arith.truncf %7 : vector<16x128xf32> to vector<16x128xbf16>
    %c0_6 = arith.constant 0 : index
    %c0_7 = arith.constant 0 : index
    %9 = vector.load %arg4[%c0_6, %c0_7] : memref<128x128xbf16, #tpu.memory_space<vmem>>, vector<128x128xbf16>
    %c0_8 = arith.constant 0 : index
    %c0_9 = arith.constant 0 : index
    %10 = vector.load %arg5[%c0_8, %c0_9] : memref<1x128xf32, #tpu.memory_space<vmem>>, vector<1x128xf32>
    %cst_10 = arith.constant dense<0.000000e+00> : vector<16x128xf32>
    %11 = tpu.matmul %8, %9, %cst_10 {dimension_numbers = #tpu.dot_dimension_numbers<[1], [0], [0], [1], [0, 0, 1, 1], [], []>} : vector<16x128xbf16>, vector<128x128xbf16>, vector<16x128xf32> -> vector<16x128xf32>
    %12 = vector.broadcast %10 : vector<1x128xf32> to vector<16x128xf32>
    %13 = arith.addf %11, %12 : vector<16x128xf32>
    %cst_11 = arith.constant 0.000000e+00 : f32
    %14 = vector.broadcast %cst_11 : f32 to vector<16x128xf32>
    %15 = arith.cmpf oge, %13, %14 : vector<16x128xf32>
    %cst_12 = arith.constant 0.00999999977 : f32
    %16 = vector.broadcast %cst_12 : f32 to vector<16x128xf32>
    %17 = arith.mulf %16, %13 : vector<16x128xf32>
    %18 = arith.select %15, %13, %17 : vector<16x128xi1>, vector<16x128xf32>
    %19 = arith.truncf %18 : vector<16x128xf32> to vector<16x128xbf16>
    %c0_13 = arith.constant 0 : index
    %c0_14 = arith.constant 0 : index
    %20 = vector.load %arg6[%c0_13, %c0_14] : memref<128x128xbf16, #tpu.memory_space<vmem>>, vector<128x128xbf16>
    %c0_15 = arith.constant 0 : index
    %c0_16 = arith.constant 0 : index
    %21 = vector.load %arg7[%c0_15, %c0_16] : memref<1x128xf32, #tpu.memory_space<vmem>>, vector<1x128xf32>
    %cst_17 = arith.constant dense<0.000000e+00> : vector<16x128xf32>
    %22 = tpu.matmul %19, %20, %cst_17 {dimension_numbers = #tpu.dot_dimension_numbers<[1], [0], [0], [1], [0, 0, 1, 1], [], []>} : vector<16x128xbf16>, vector<128x128xbf16>, vector<16x128xf32> -> vector<16x128xf32>
    %23 = vector.broadcast %21 : vector<1x128xf32> to vector<16x128xf32>
    %24 = arith.addf %22, %23 : vector<16x128xf32>
    %cst_18 = arith.constant dense<0xFF800000> : vector<16xf32>
    %25 = vector.multi_reduction <maximumf>, %24, %cst_18 [1] : vector<16x128xf32> to vector<16xf32>
    %26 = vector.shape_cast %25 : vector<16xf32> to vector<16x1xf32>
    %27 = vector.broadcast %26 : vector<16x1xf32> to vector<16x128xf32>
    %28 = arith.subf %24, %27 : vector<16x128xf32>
    %29 = math.exp %28 : vector<16x128xf32>
    %cst_19 = arith.constant dense<0.000000e+00> : vector<16xf32>
    %30 = vector.multi_reduction <add>, %29, %cst_19 [1] : vector<16x128xf32> to vector<16xf32>
    %31 = vector.shape_cast %30 : vector<16xf32> to vector<16x1xf32>
    %32 = tpu.reciprocal %31 : vector<16x1xf32> -> vector<16x1xf32>
    %33 = vector.broadcast %32 : vector<16x1xf32> to vector<16x128xf32>
    %34 = arith.mulf %29, %33 : vector<16x128xf32>
    %35 = vector.extract_strided_slice %34 {offsets = [0, 0], sizes = [16, 8], strides = [1, 1]} : vector<16x128xf32> to vector<16x8xf32>
    %c0_20 = arith.constant 0 : index
    %c0_21 = arith.constant 0 : index
    %36 = vector.load %arg8[%c0_20, %c0_21] : memref<16x8xf32, #tpu.memory_space<vmem>>, vector<16x8xf32>
    tpu.vector_store %arg8[%c0_20, %c0_21], %35 {strides = array<i32>} : memref<16x8xf32, #tpu.memory_space<vmem>>, vector<16x8xf32>,
    return
  }
  func.func @transform_0(%arg0: i32) -> (i32, i32) {
    %c0_i32 = arith.constant 0 : i32
    %c0_i32_0 = arith.constant 0 : i32
    return %arg0, %c0_i32 : i32, i32
  }
  func.func @transform_1(%arg0: i32) -> (i32, i32) {
    %c0_i32 = arith.constant 0 : i32
    %c0_i32_0 = arith.constant 0 : i32
    %c0_i32_1 = arith.constant 0 : i32
    return %c0_i32, %c0_i32_0 : i32, i32
  }
  func.func @transform_2(%arg0: i32) -> (i32, i32) {
    %c0_i32 = arith.constant 0 : i32
    %c0_i32_0 = arith.constant 0 : i32
    %c0_i32_1 = arith.constant 0 : i32
    return %c0_i32, %c0_i32_0 : i32, i32
  }
  func.func @transform_3(%arg0: i32) -> (i32, i32) {
    %c0_i32 = arith.constant 0 : i32
    %c0_i32_0 = arith.constant 0 : i32
    %c0_i32_1 = arith.constant 0 : i32
    return %c0_i32, %c0_i32_0 : i32, i32
  }
  func.func @transform_4(%arg0: i32) -> (i32, i32) {
    %c0_i32 = arith.constant 0 : i32
    %c0_i32_0 = arith.constant 0 : i32
    %c0_i32_1 = arith.constant 0 : i32
    return %c0_i32, %c0_i32_0 : i32, i32
  }
  func.func @transform_5(%arg0: i32) -> (i32, i32) {
    %c0_i32 = arith.constant 0 : i32
    %c0_i32_0 = arith.constant 0 : i32
    %c0_i32_1 = arith.constant 0 : i32
    return %c0_i32, %c0_i32_0 : i32, i32
  }
  func.func @transform_6(%arg0: i32) -> (i32, i32) {
    %c0_i32 = arith.constant 0 : i32
    %c0_i32_0 = arith.constant 0 : i32
    %c0_i32_1 = arith.constant 0 : i32
    return %c0_i32, %c0_i32_0 : i32, i32
  }
  func.func @transform_7(%arg0: i32) -> (i32, i32) {
    %c0_i32 = arith.constant 0 : i32
    %c0_i32_0 = arith.constant 0 : i32
    return %arg0, %c0_i32 : i32, i32
  }
}

</mosaic_0001>

<llo_original>
// kernel: tpu_custom_call.1
$region0: #{tpu_custom_call.1}
  #allocation0 [shape = 'u32[]', space=smem, size = 0x4, offset = 0x4, fixed_abs, tag = 'smem constant byte address 0x4 - core index']
  #allocation1 [shape = 'u32[144,128]{1,0:T(1,128)}', space=vmem, size = 0x12000, scoped, tag = 'internal scratch']
  %s0 = inlined_call_operand.hbm [shape: bf16[16,32], index: 0, kind: input, shape index: {}]
  %s1 = inlined_call_operand.hbm [shape: bf16[32,128], index: 1, kind: input, shape index: {}]
  %s2 = inlined_call_operand.vmem [shape: f32[1,128], index: 2, kind: input, shape index: {}]
  %s3 = inlined_call_operand.hbm [shape: bf16[128,128], index: 3, kind: input, shape index: {}]
  %s4 = inlined_call_operand.vmem [shape: f32[1,128], index: 4, kind: input, shape index: {}]
  %s5 = inlined_call_operand.hbm [shape: bf16[128,128], index: 5, kind: input, shape index: {}]
  %s6 = inlined_call_operand.vmem [shape: f32[1,128], index: 6, kind: input, shape index: {}]
  %s7 = inlined_call_operand.vmem [shape: f32[16,8], index: 7, kind: output, shape index: {}]
  %s8 = sld [smem:[#allocation0]]
  $region54: #{tpu_custom_call.1} parent=0
    _
  %s10 = ssub.s32 1, %s8
  %s11 = scalar_select 0, %s10, %s8
  $region1: #{tpu_custom_call.1} parent=0
    #allocation2 [shape = 'u8[4096]{0}', space=vmem, size = 0x1000, scoped, tag = 'input window, operand 0, single buffered']
    #allocation3 [shape = 's32[1]{0}', space=sflag, size = 0x4, scoped, tag = 'scoped memory for tpu_custom_call.1']
    #allocation4 [shape = 'u8[8192]{0}', space=vmem, size = 0x2000, scoped, tag = 'input window, operand 1, single buffered']
    #allocation5 [shape = 's32[1]{0}', space=sflag, size = 0x4, scoped, tag = 'scoped memory for tpu_custom_call.1']
    #allocation6 [shape = 'u8[32768]{0}', space=vmem, size = 0x8000, scoped, tag = 'input window, operand 3, single buffered']
    #allocation7 [shape = 'u8[32768]{0}', space=vmem, size = 0x8000, scoped, tag = 'input window, operand 5, single buffered']
    #allocation8 [shape = 's32[1]{0}', space=sflag, size = 0x4, scoped, tag = 'scoped memory for tpu_custom_call.1']
    %12 = vsyncpa [#allocation3], 0
    %13 = vsyncpa [#allocation5], 0
    %14 = vsyncpa [#allocation8], 0
    // Predicated region
    $region2: #{tpu_custom_call.1} parent=1 // pred_check
      _
    $region3: #{tpu_custom_call.1} parent=1 // pred_check_branch
      %16 = sbr.rel (0) target = $region5
    $region4: #{tpu_custom_call.1} parent=1 // pred_region
      %s18 = ssub.s32 128, 128
      %19 = vsyncadd [#allocation3], %s18
      %s20 = sshll.u32 [#allocation2], 4
      %s21 = int_to_ptr.vmem [resolvable:$true] %s20
      %26 = dma.hbm_to_vmem [thread:$0]  %s0, 128, %s21, [#allocation3], 64, 64, 4
    $region5: #{tpu_custom_call.1} parent=1 // pred_fallthru
      _
    // Predicated region
    $region6: #{tpu_custom_call.1} parent=1 // pred_check
      _
    $region7: #{tpu_custom_call.1} parent=1 // pred_check_branch
      %28 = sbr.rel (0) target = $region9
    $region8: #{tpu_custom_call.1} parent=1 // pred_region
      %s30 = ssub.s32 256, 256
      %31 = vsyncadd [#allocation5], %s30
      %s32 = sshll.u32 [#allocation4], 4
      %s33 = int_to_ptr.vmem [resolvable:$true] %s32
      %38 = dma.hbm_to_vmem [thread:$0]  %s1, 256, %s33, [#allocation5], 64, 64, 4
    $region9: #{tpu_custom_call.1} parent=1 // pred_fallthru
      _
    // Predicated region
    $region10: #{tpu_custom_call.1} parent=1 // pred_check
      _
    $region11: #{tpu_custom_call.1} parent=1 // pred_check_branch
      %40 = sbr.rel (0) target = $region13
    $region12: #{tpu_custom_call.1} parent=1 // pred_region
      _
    $region13: #{tpu_custom_call.1} parent=1 // pred_fallthru
      _
    // Predicated region
    $region14: #{tpu_custom_call.1} parent=1 // pred_check
      _
    $region15: #{tpu_custom_call.1} parent=1 // pred_check_branch
      %42 = sbr.rel (0) target = $region17
    $region16: #{tpu_custom_call.1} parent=1 // pred_region
      %s44 = ssub.s32 1024, 1024
      %45 = vsyncadd [#allocation5], %s44
      %s46 = sshll.u32 [#allocation6], 4
      %s47 = int_to_ptr.vmem [resolvable:$true] %s46
      %52 = dma.hbm_to_vmem [thread:$0]  %s3, 1024, %s47, [#allocation5], 64, 64, 4
    $region17: #{tpu_custom_call.1} parent=1 // pred_fallthru
      _
    // Predicated region
    $region18: #{tpu_custom_call.1} parent=1 // pred_check
      _
    $region19: #{tpu_custom_call.1} parent=1 // pred_check_branch
      %54 = sbr.rel (0) target = $region21
    $region20: #{tpu_custom_call.1} parent=1 // pred_region
      _
    $region21: #{tpu_custom_call.1} parent=1 // pred_fallthru
      _
    // Predicated region
    $region22: #{tpu_custom_call.1} parent=1 // pred_check
      _
    $region23: #{tpu_custom_call.1} parent=1 // pred_check_branch
      %56 = sbr.rel (0) target = $region25
    $region24: #{tpu_custom_call.1} parent=1 // pred_region
      %s58 = ssub.s32 1024, 1024
      %59 = vsyncadd [#allocation8], %s58
      %s60 = sshll.u32 [#allocation7], 4
      %s61 = int_to_ptr.vmem [resolvable:$true] %s60
      %66 = dma.hbm_to_vmem [thread:$0]  %s5, 1024, %s61, [#allocation8], 64, 64, 4
    $region25: #{tpu_custom_call.1} parent=1 // pred_fallthru
      _
    // Predicated region
    $region26: #{tpu_custom_call.1} parent=1 // pred_check
      _
    $region27: #{tpu_custom_call.1} parent=1 // pred_check_branch
      %68 = sbr.rel (0) target = $region29
    $region28: #{tpu_custom_call.1} parent=1 // pred_region
      _
    $region29: #{tpu_custom_call.1} parent=1 // pred_fallthru
      _
    // Predicated region
    $region30: #{tpu_custom_call.1} parent=1 // pred_check
      _
    $region31: #{tpu_custom_call.1} parent=1 // pred_check_branch
      %70 = sbr.rel (0) target = $region33
    $region32: #{tpu_custom_call.1} parent=1 // pred_region
      %71 = dma.done [#allocation3], 128
    $region33: #{tpu_custom_call.1} parent=1 // pred_fallthru
      _
    // Predicated region
    $region34: #{tpu_custom_call.1} parent=1 // pred_check
      _
    $region35: #{tpu_custom_call.1} parent=1 // pred_check_branch
      %73 = sbr.rel (0) target = $region37
    $region36: #{tpu_custom_call.1} parent=1 // pred_region
      %74 = dma.done [#allocation5], 256
    $region37: #{tpu_custom_call.1} parent=1 // pred_fallthru
      _
    // Predicated region
    $region38: #{tpu_custom_call.1} parent=1 // pred_check
      _
    $region39: #{tpu_custom_call.1} parent=1 // pred_check_branch
      %76 = sbr.rel (0) target = $region41
    $region40: #{tpu_custom_call.1} parent=1 // pred_region
      %77 = dma.done [#allocation5], 1024
    $region41: #{tpu_custom_call.1} parent=1 // pred_fallthru
      _
    // Predicated region
    $region42: #{tpu_custom_call.1} parent=1 // pred_check
      _
    $region43: #{tpu_custom_call.1} parent=1 // pred_check_branch
      %79 = sbr.rel (0) target = $region45
    $region44: #{tpu_custom_call.1} parent=1 // pred_region
      %80 = dma.done [#allocation8], 1024
    $region45: #{tpu_custom_call.1} parent=1 // pred_fallthru
      _
    %v82 = vld [vmem:[#allocation2] sm:$0xf]
    %v83 = vld [vmem:[#allocation2 + $0x4] sm:$0xf]
    %v84 = vld [vmem:[#allocation4] sm:$0xf]
    %v85 = vld [vmem:[#allocation4 + $0x4] sm:$0xf]
    %v86 = vld [vmem:[#allocation4 + $0x8] sm:$0xf]
    %v87 = vld [vmem:[#allocation4 + $0xc] sm:$0xf]
    %v88 = vld [vmem:[%s2] sm:$0x1]
    %v90 = vlaneseq
    %v91 = vshrl.u32 %v90, 7
    %v92 = vsub.s32 0, %v91
    %v93 = vrot.slane %v88, %v92
    %v97 = vunpack.c.l.b16 %v82
    %v98 = vunpack.c.l.b16 %v83
    %v99 = vpack.c.b16 %v98, %v97
    %v104 = vunpack.c.l.b16 %v84
    %v105 = vunpack.c.l.b16 %v85
    %v106 = vunpack.c.l.b16 %v86
    %v107 = vunpack.c.l.b16 %v87
    %v108 = vpack.c.b16 %v105, %v104
    %v109 = vpack.c.b16 %v107, %v106
    %vm112 = vcmask 261120
    %v114 = vsel %vm112, %v99, 0
    %116 = vmatprep.subr.bf16.mxu0 0
    %117 = vmatpush1.bf16.msra.mxu0 %v108
    %118 = vmatprep.subr.bf16.mxu0 0
    %119 = vmatpush1.bf16.msra.mxu0 %v109
    %120 = vmatprep.subr.bf16.mxu0 0
    %121 = vmatpush1.bf16.msra.mxu0 0
    %122 = vmatprep.subr.bf16.mxu0 0
    %123 = vmatpush1.bf16.msra.mxu0 0
    %124 = vmatprep.subr.bf16.mxu0 0
    %125 = vmatpush1.bf16.msra.mxu0 0
    %126 = vmatprep.subr.bf16.mxu0 0
    %127 = vmatpush1.bf16.msra.mxu0 0
    %128 = vmatprep.subr.bf16.mxu0 0
    %129 = vmatpush1.bf16.msra.mxu0 0
    %130 = vmatprep.subr.bf16.mxu0 0
    %131 = vmatpush1.bf16.msra.mxu0 0
    %132 = vmatprep.subr.bf16.mxu0 0
    %133 = vmatpush1.bf16.msra.mxu0 0
    %134 = vmatprep.subr.bf16.mxu0 0
    %135 = vmatpush1.bf16.msra.mxu0 0
    %136 = vmatprep.subr.bf16.mxu0 0
    %137 = vmatpush1.bf16.msra.mxu0 0
    %138 = vmatprep.subr.bf16.mxu0 0
    %139 = vmatpush1.bf16.msra.mxu0 0
    %140 = vmatprep.subr.bf16.mxu0 0
    %141 = vmatpush1.bf16.msra.mxu0 0
    %142 = vmatprep.subr.bf16.mxu0 0
    %143 = vmatpush1.bf16.msra.mxu0 0
    %144 = vmatprep.subr.bf16.mxu0 0
    %145 = vmatpush1.bf16.msra.mxu0 0
    %146 = vmatprep.subr.bf16.mxu0 0
    %147 = vmatpush1.bf16.msra.mxu0 0
    %148 = vmatprep.mubr.bf16.mxu0 0
    %149 = vmatmul.mubr.bf16.gmra.mrb[0].mxu0 %v114
    %v150 = vpop.f32.mrb[0].mxu0
    %v151 = vadd.f32 %v93, %v150
    %v152 = vpop.f32.mrb[0].mxu0
    %v153 = vpop.f32.mrb[0].mxu0
    %v154 = vadd.f32 %v93, %v153
    %v155 = vpop.f32.mrb[0].mxu0
    %156 = vdwg.mxu0
    %v157 = vmax.f32 %v151, 0.0
    %v158 = vmax.f32 %v154, 0.0
    %v159 = vpack.c.bf16 %v158, %v157
    %v160 = vld [vmem:[#allocation6] sm:$0xf]
    %v161 = vld [vmem:[#allocation6 + $0x4] sm:$0xf]
    %v162 = vld [vmem:[#allocation6 + $0x8] sm:$0xf]
    %v163 = vld [vmem:[#allocation6 + $0xc] sm:$0xf]
    %v164 = vld [vmem:[#allocation6 + $0x10] sm:$0xf]
    %v165 = vld [vmem:[#allocation6 + $0x14] sm:$0xf]
    %v166 = vld [vmem:[#allocation6 + $0x18] sm:$0xf]
    %v167 = vld [vmem:[#allocation6 + $0x1c] sm:$0xf]
    %v168 = vld [vmem:[#allocation6 + $0x20] sm:$0xf]
    %v169 = vld [vmem:[#allocation6 + $0x24] sm:$0xf]
    %v170 = vld [vmem:[#allocation6 + $0x28] sm:$0xf]
    %v171 = vld [vmem:[#allocation6 + $0x2c] sm:$0xf]
    %v172 = vld [vmem:[#allocation6 + $0x30] sm:$0xf]
    %v173 = vld [vmem:[#allocation6 + $0x34] sm:$0xf]
    %v174 = vld [vmem:[#allocation6 + $0x38] sm:$0xf]
    %v175 = vld [vmem:[#allocation6 + $0x3c] sm:$0xf]
    %v176 = vld [vmem:[%s4] sm:$0x1]
    %v178 = vlaneseq
    %v179 = vshrl.u32 %v178, 7
    %v180 = vsub.s32 0, %v179
    %v181 = vrot.slane %v176, %v180
    %v199 = vunpack.c.l.b16 %v160
    %v200 = vunpack.c.l.b16 %v161
    %v201 = vunpack.c.l.b16 %v162
    %v202 = vunpack.c.l.b16 %v163
    %v203 = vunpack.c.l.b16 %v164
    %v204 = vunpack.c.l.b16 %v165
    %v205 = vunpack.c.l.b16 %v166
    %v206 = vunpack.c.l.b16 %v167
    %v207 = vunpack.c.l.b16 %v168
    %v208 = vunpack.c.l.b16 %v169
    %v209 = vunpack.c.l.b16 %v170
    %v210 = vunpack.c.l.b16 %v171
    %v211 = vunpack.c.l.b16 %v172
    %v212 = vunpack.c.l.b16 %v173
    %v213 = vunpack.c.l.b16 %v174
    %v214 = vunpack.c.l.b16 %v175
    %v215 = vpack.c.b16 %v200, %v199
    %v216 = vpack.c.b16 %v202, %v201
    %v217 = vpack.c.b16 %v204, %v203
    %v218 = vpack.c.b16 %v206, %v205
    %v219 = vpack.c.b16 %v208, %v207
    %v220 = vpack.c.b16 %v210, %v209
    %v221 = vpack.c.b16 %v212, %v211
    %v222 = vpack.c.b16 %v214, %v213
    %231 = vmatprep.subr.bf16.mxu0 0
    %232 = vmatpush1.bf16.msra.mxu0 %v215
    %233 = vmatprep.subr.bf16.mxu0 0
    %234 = vmatpush1.bf16.msra.mxu0 %v216
    %235 = vmatprep.subr.bf16.mxu0 0
    %236 = vmatpush1.bf16.msra.mxu0 %v217
    %237 = vmatprep.subr.bf16.mxu0 0
    %238 = vmatpush1.bf16.msra.mxu0 %v218
    %239 = vmatprep.subr.bf16.mxu0 0
    %240 = vmatpush1.bf16.msra.mxu0 %v219
    %241 = vmatprep.subr.bf16.mxu0 0
    %242 = vmatpush1.bf16.msra.mxu0 %v220
    %243 = vmatprep.subr.bf16.mxu0 0
    %244 = vmatpush1.bf16.msra.mxu0 %v221
    %245 = vmatprep.subr.bf16.mxu0 0
    %246 = vmatpush1.bf16.msra.mxu0 %v222
    %247 = vmatprep.subr.bf16.mxu0 0
    %248 = vmatpush1.bf16.msra.mxu0 0
    %249 = vmatprep.subr.bf16.mxu0 0
    %250 = vmatpush1.bf16.msra.mxu0 0
    %251 = vmatprep.subr.bf16.mxu0 0
    %252 = vmatpush1.bf16.msra.mxu0 0
    %253 = vmatprep.subr.bf16.mxu0 0
    %254 = vmatpush1.bf16.msra.mxu0 0
    %255 = vmatprep.subr.bf16.mxu0 0
    %256 = vmatpush1.bf16.msra.mxu0 0
    %257 = vmatprep.subr.bf16.mxu0 0
    %258 = vmatpush1.bf16.msra.mxu0 0
    %259 = vmatprep.subr.bf16.mxu0 0
    %260 = vmatpush1.bf16.msra.mxu0 0
    %261 = vmatprep.subr.bf16.mxu0 0
    %262 = vmatpush1.bf16.msra.mxu0 0
    %263 = vmatprep.mubr.bf16.mxu0 0
    %264 = vmatmul.mubr.bf16.gmra.mrb[0].mxu0 %v159
    %v265 = vpop.f32.mrb[0].mxu0
    %v266 = vadd.f32 %v181, %v265
    %v267 = vpop.f32.mrb[0].mxu0
    %v268 = vpop.f32.mrb[0].mxu0
    %v269 = vadd.f32 %v181, %v268
    %v270 = vpop.f32.mrb[0].mxu0
    %271 = vdwg.mxu0
    %vm272 = vcmp.ge.f32.partialorder %v266, 0.0
    %vm273 = vcmp.ge.f32.partialorder %v269, 0.0
    %v274 = vmul.f32 %v266, 0.01
    %v275 = vmul.f32 %v269, 0.01
    %v276 = vsel %vm272, %v266, %v274
    %v277 = vsel %vm273, %v269, %v275
    %v278 = vpack.c.bf16 %v277, %v276
    %v279 = vld [vmem:[#allocation7] sm:$0xf]
    %v280 = vld [vmem:[#allocation7 + $0x4] sm:$0xf]
    %v281 = vld [vmem:[#allocation7 + $0x8] sm:$0xf]
    %v282 = vld [vmem:[#allocation7 + $0xc] sm:$0xf]
    %v283 = vld [vmem:[#allocation7 + $0x10] sm:$0xf]
    %v284 = vld [vmem:[#allocation7 + $0x14] sm:$0xf]
    %v285 = vld [vmem:[#allocation7 + $0x18] sm:$0xf]
    %v286 = vld [vmem:[#allocation7 + $0x1c] sm:$0xf]
    %v287 = vld [vmem:[#allocation7 + $0x20] sm:$0xf]
    %v288 = vld [vmem:[#allocation7 + $0x24] sm:$0xf]
    %v289 = vld [vmem:[#allocation7 + $0x28] sm:$0xf]
    %v290 = vld [vmem:[#allocation7 + $0x2c] sm:$0xf]
    %v291 = vld [vmem:[#allocation7 + $0x30] sm:$0xf]
    %v292 = vld [vmem:[#allocation7 + $0x34] sm:$0xf]
    %v293 = vld [vmem:[#allocation7 + $0x38] sm:$0xf]
    %v294 = vld [vmem:[#allocation7 + $0x3c] sm:$0xf]
    %v295 = vld [vmem:[%s6] sm:$0x1]
    %v297 = vlaneseq
    %v298 = vshrl.u32 %v297, 7
    %v299 = vsub.s32 0, %v298
    %v300 = vrot.slane %v295, %v299
    %v318 = vunpack.c.l.b16 %v279
    %v319 = vunpack.c.l.b16 %v280
    %v320 = vunpack.c.l.b16 %v281
    %v321 = vunpack.c.l.b16 %v282
    %v322 = vunpack.c.l.b16 %v283
    %v323 = vunpack.c.l.b16 %v284
    %v324 = vunpack.c.l.b16 %v285
    %v325 = vunpack.c.l.b16 %v286
    %v326 = vunpack.c.l.b16 %v287
    %v327 = vunpack.c.l.b16 %v288
    %v328 = vunpack.c.l.b16 %v289
    %v329 = vunpack.c.l.b16 %v290
    %v330 = vunpack.c.l.b16 %v291
    %v331 = vunpack.c.l.b16 %v292
    %v332 = vunpack.c.l.b16 %v293
    %v333 = vunpack.c.l.b16 %v294
    %v334 = vpack.c.b16 %v319, %v318
    %v335 = vpack.c.b16 %v321, %v320
    %v336 = vpack.c.b16 %v323, %v322
    %v337 = vpack.c.b16 %v325, %v324
    %v338 = vpack.c.b16 %v327, %v326
    %v339 = vpack.c.b16 %v329, %v328
    %v340 = vpack.c.b16 %v331, %v330
    %v341 = vpack.c.b16 %v333, %v332
    %350 = vmatprep.subr.bf16.mxu0 0
    %351 = vmatpush1.bf16.msra.mxu0 %v334
    %352 = vmatprep.subr.bf16.mxu0 0
    %353 = vmatpush1.bf16.msra.mxu0 %v335
    %354 = vmatprep.subr.bf16.mxu0 0
    %355 = vmatpush1.bf16.msra.mxu0 %v336
    %356 = vmatprep.subr.bf16.mxu0 0
    %357 = vmatpush1.bf16.msra.mxu0 %v337
    %358 = vmatprep.subr.bf16.mxu0 0
    %359 = vmatpush1.bf16.msra.mxu0 %v338
    %360 = vmatprep.subr.bf16.mxu0 0
    %361 = vmatpush1.bf16.msra.mxu0 %v339
    %362 = vmatprep.subr.bf16.mxu0 0
    %363 = vmatpush1.bf16.msra.mxu0 %v340
    %364 = vmatprep.subr.bf16.mxu0 0
    %365 = vmatpush1.bf16.msra.mxu0 %v341
    %366 = vmatprep.subr.bf16.mxu0 0
    %367 = vmatpush1.bf16.msra.mxu0 0
    %368 = vmatprep.subr.bf16.mxu0 0
    %369 = vmatpush1.bf16.msra.mxu0 0
    %370 = vmatprep.subr.bf16.mxu0 0
    %371 = vmatpush1.bf16.msra.mxu0 0
    %372 = vmatprep.subr.bf16.mxu0 0
    %373 = vmatpush1.bf16.msra.mxu0 0
    %374 = vmatprep.subr.bf16.mxu0 0
    %375 = vmatpush1.bf16.msra.mxu0 0
    %376 = vmatprep.subr.bf16.mxu0 0
    %377 = vmatpush1.bf16.msra.mxu0 0
    %378 = vmatprep.subr.bf16.mxu0 0
    %379 = vmatpush1.bf16.msra.mxu0 0
    %380 = vmatprep.subr.bf16.mxu0 0
    %381 = vmatpush1.bf16.msra.mxu0 0
    %382 = vmatprep.mubr.bf16.mxu0 0
    %383 = vmatmul.mubr.bf16.gmra.mrb[0].mxu0 %v278
    %v384 = vpop.f32.mrb[0].mxu0
    %v385 = vadd.f32 %v300, %v384
    %v386 = vpop.f32.mrb[0].mxu0
    %v387 = vpop.f32.mrb[0].mxu0
    %v388 = vadd.f32 %v300, %v387
    %v389 = vpop.f32.mrb[0].mxu0
    %390 = vdwg.mxu0
    %391 = vmax.xlane.f32.xlu0 %v385
    %v392 = vpop.xlane.xlu0 %391
    %393 = vmax.xlane.f32.xlu0 %v388
    %v394 = vpop.xlane.xlu0 %393
    %v395 = vsub.f32 %v385, %v392
    %v396 = vsub.f32 %v388, %v394
    %v397 = vmul.f32 %v395, 1.442695
    %v398 = vpow.pop %v397
    %v399 = vmul.f32 %v396, 1.442695
    %v400 = vpow.pop %v399
    %401 = vadd.xlane.f32.xlu0 %v398
    %v402 = vpop.xlane.xlu0 %401
    %403 = vadd.xlane.f32.xlu0 %v400
    %v404 = vpop.xlane.xlu0 %403
    %v405 = vrcp.pop %v402
    %v406 = vrcp.pop %v404
    %v407 = vmul.f32 %v398, %v405
    %v408 = vmul.f32 %v400, %v406
    %vm409 = vcmask 64512
    %410 = vst.msk [vmem:[%s7] sm:$0xff] %vm409, %v407
    %411 = vst.msk [vmem:[%s7 + $0x8] sm:$0xff] %vm409, %v408
    // Predicated region
    $region46: #{tpu_custom_call.1} parent=1 // pred_check
      _
    $region47: #{tpu_custom_call.1} parent=1 // pred_check_branch
      %413 = sbr.rel (0) target = $region49
    $region48: #{tpu_custom_call.1} parent=1 // pred_region
      _
    $region49: #{tpu_custom_call.1} parent=1 // pred_fallthru
      _
    // Predicated region
    $region50: #{tpu_custom_call.1} parent=1 // pred_check
      _
    $region51: #{tpu_custom_call.1} parent=1 // pred_check_branch
      %415 = sbr.rel (0) target = $region53
    $region52: #{tpu_custom_call.1} parent=1 // pred_region
      _
    $region53: #{tpu_custom_call.1} parent=1 // pred_fallthru
      _
    %416 = vsyncpa [#allocation3], 1
    %417 = vsyncpa [#allocation5], 1
    %418 = vsyncpa [#allocation8], 1

</llo_original>
